<compile_context>
chip_gen: v7x
topology: tpu7x:2x2x1
jax: 0.10.0
libtpu: 0.0.40
codegen_flags: <defaults>
</compile_context>

<pallas_src>
import functools

import jax
import jax.numpy as jnp
from jax.experimental import pallas as pl
from jax.experimental.pallas import tpu as pltpu


_LANE = 128
_SUBLANE = 8
# Target bytes for one x tile per grid step (double-buffered in+out => ~4x).
_TARGET_TILE_BYTES = 2 * 1024 * 1024
# Hard cap for a single-pass tile; beyond this we switch to the two-pass path.
_SINGLE_PASS_ROW_LIMIT_BYTES = 6 * 1024 * 1024
# Scoped VMEM limit requested from Mosaic (safe on v5e/v6e/v7x).
_VMEM_LIMIT_BYTES = 32 * 1024 * 1024


# --------------------------------------------------------------------------
# In-kernel gate math (shared): pooled mean -> relu(conv1) -> sigmoid(conv2).
# Weights are pre-transposed so the matmuls batch over the tile's batch rows.
# --------------------------------------------------------------------------
def _gate_from_mean(s, w1t_ref, b1_ref, w2t_ref, b2_ref):
    # s: (TN, C) f32 pooled means  ->  (TN, OUT) f32 sigmoid gate.
    z = jnp.dot(s, w1t_ref[...], preferred_element_type=jnp.float32) + b1_ref[...]
    z = jnp.maximum(z, 0.0)
    g = jnp.dot(z, w2t_ref[...], preferred_element_type=jnp.float32) + b2_ref[...]
    return jax.nn.sigmoid(g)


# --------------------------------------------------------------------------
# Single-pass kernels (full L resident per batch row).
# --------------------------------------------------------------------------
def _se_kernel_3d(x_ref, w1t_ref, b1_ref, w2t_ref, b2_ref, o_ref):
    x = x_ref[...].astype(jnp.float32)                      # (TN, C, L)
    s = jnp.sum(x, axis=-1) * (1.0 / x.shape[-1])           # (TN, C)
    g = _gate_from_mean(s, w1t_ref, b1_ref, w2t_ref, b2_ref)
    o_ref[...] = (g[:, :, None] * x).astype(o_ref.dtype)


def _se_kernel_flat(x_ref, w1t_ref, b1_ref, w2t_ref, b2_ref, o_ref, *, C, L):
    # x block is a lane-dense (TN, C*L) slab; reshape to (TN, C, L) in VMEM.
    xf = x_ref[...].astype(jnp.float32)                     # (TN, C*L)
    tn = xf.shape[0]
    x3 = xf.reshape(tn, C, L)
    s = jnp.sum(x3, axis=-1) * (1.0 / L)                    # (TN, C)
    g = _gate_from_mean(s, w1t_ref, b1_ref, w2t_ref, b2_ref)
    y3 = g[:, :, None] * x3
    o_ref[...] = y3.reshape(tn, C * L).astype(o_ref.dtype)  # lane-dense store


# --------------------------------------------------------------------------
# Two-pass kernels (streaming over L-tiles for large L).
# --------------------------------------------------------------------------
def _se_gate_kernel(x_ref, w1t_ref, b1_ref, w2t_ref, b2_ref, g_ref, acc_ref,
                    *, L, TL):
    li = pl.program_id(1)

    @pl.when(li == 0)
    def _():
        acc_ref[...] = jnp.zeros_like(acc_ref)

    x = x_ref[...].astype(jnp.float32)                      # (TN, C, TL)
    if L % TL != 0:
        # Ragged last L tile: mask out-of-range lanes so they do not pollute
        # the pooled sum.
        lane = li * TL + jax.lax.broadcasted_iota(jnp.int32, x.shape, 2)
        x = jnp.where(lane < L, x, 0.0)
    acc_ref[...] += jnp.sum(x, axis=-1)                     # (TN, C)

    @pl.when(li == pl.num_programs(1) - 1)
    def _():
        s = acc_ref[...] * (1.0 / L)
        g_ref[...] = _gate_from_mean(s, w1t_ref, b1_ref, w2t_ref, b2_ref)


def _se_scale_kernel(g_ref, x_ref, o_ref):
    g = g_ref[...]                                          # (TN, C) f32
    x = x_ref[...].astype(jnp.float32)                      # (TN, C, TL)
    o_ref[...] = (g[:, :, None] * x).astype(o_ref.dtype)


# --------------------------------------------------------------------------
# Tiling helpers.
# --------------------------------------------------------------------------
def _choose_tn(N, row_bytes, *, sublane_align):
    """Batch rows per grid step (~_TARGET_TILE_BYTES per x tile)."""
    tn = int(max(1, _TARGET_TILE_BYTES // max(row_bytes, 1)))
    if tn >= N:
        return N
    if sublane_align:
        # Block second-to-last dim must be a multiple of 8 (or the full N).
        tn = max(_SUBLANE, (tn // _SUBLANE) * _SUBLANE)
        if tn >= N:
            return N
    return tn


def _choose_tl(L, tn, C, elem):
    """Lane tile (multiple of 128) for the streaming two-pass kernels."""
    if L <= _LANE:
        return L
    by_budget = _TARGET_TILE_BYTES // max(tn * C * elem, 1)
    tl = (min(int(by_budget), L) // _LANE) * _LANE
    return max(_LANE, tl)


def _cost_estimate(N, C, L, SE, OUT, elem):
    return pl.CostEstimate(
        flops=2 * N * C * L + 2 * N * SE * (C + OUT),
        transcendentals=N * OUT,
        bytes_accessed=2 * N * C * L * elem + 4 * (C * SE + SE * OUT + SE + OUT),
    )


# --------------------------------------------------------------------------
# pallas_call wrappers.
# --------------------------------------------------------------------------
def _se_single_pass(x, w1t, b1r, w2t, b2r, *, flat):
    N, C, L = x.shape
    SE = w1t.shape[1]
    OUT = w2t.shape[1]
    elem = x.dtype.itemsize
    row_bytes = C * L * elem

    if flat:
        tn = _choose_tn(N, row_bytes, sublane_align=True)
        kernel = functools.partial(_se_kernel_flat, C=C, L=L)
        x_in = x.reshape(N, C * L)          # free: contiguous row-major reshape
        x_spec = pl.BlockSpec((tn, C * L), lambda n: (n, 0))
        out_spec = pl.BlockSpec((tn, C * L), lambda n: (n, 0))
        out_shape = jax.ShapeDtypeStruct((N, C * L), x.dtype)
    else:
        tn = _choose_tn(N, row_bytes, sublane_align=False)
        kernel = _se_kernel_3d
        x_in = x
        x_spec = pl.BlockSpec((tn, C, L), lambda n: (n, 0, 0))
        out_spec = pl.BlockSpec((tn, C, L), lambda n: (n, 0, 0))
        out_shape = jax.ShapeDtypeStruct((N, C, L), x.dtype)

    wspecs = [pl.BlockSpec(w.shape, lambda n: (0, 0)) for w in (w1t, b1r, w2t, b2r)]

    out = pl.pallas_call(
        kernel,
        out_shape=out_shape,
        grid_spec=pltpu.PrefetchScalarGridSpec(
            num_scalar_prefetch=0,
            grid=(pl.cdiv(N, tn),),
            in_specs=[x_spec] + wspecs,
            out_specs=out_spec,
        ),
        compiler_params=pltpu.CompilerParams(
            dimension_semantics=("parallel",),
            vmem_limit_bytes=_VMEM_LIMIT_BYTES,
        ),
        cost_estimate=_cost_estimate(N, C, L, SE, OUT, elem),
    )(x_in, w1t, b1r, w2t, b2r)
    return out.reshape(N, C, L)


def _se_two_pass(x, w1t, b1r, w2t, b2r):
    N, C, L = x.shape
    SE = w1t.shape[1]
    OUT = w2t.shape[1]
    elem = x.dtype.itemsize

    tn = N if N <= _SUBLANE else _SUBLANE
    tl = _choose_tl(L, tn, C, elem)
    grid = (pl.cdiv(N, tn), pl.cdiv(L, tl))

    x_spec = pl.BlockSpec((tn, C, tl), lambda n, l: (n, 0, l))
    g_spec = pl.BlockSpec((tn, C), lambda n, l: (n, 0))
    wspecs = [pl.BlockSpec(w.shape, lambda n, l: (0, 0))
              for w in (w1t, b1r, w2t, b2r)]

    # Pass A: pooled mean over L (accumulated across L tiles) + both 1x1 convs
    # + sigmoid, batched over the tile's batch rows -> (N, C) gate.
    gates = pl.pallas_call(
        functools.partial(_se_gate_kernel, L=L, TL=tl),
        out_shape=jax.ShapeDtypeStruct((N, C), jnp.float32),
        grid_spec=pltpu.PrefetchScalarGridSpec(
            num_scalar_prefetch=0,
            grid=grid,
            in_specs=[x_spec] + wspecs,
            out_specs=g_spec,
            scratch_shapes=[pltpu.VMEM((tn, C), jnp.float32)],
        ),
        compiler_params=pltpu.CompilerParams(
            dimension_semantics=("parallel", "arbitrary"),
            vmem_limit_bytes=_VMEM_LIMIT_BYTES,
        ),
        cost_estimate=pl.CostEstimate(
            flops=N * C * L + 2 * N * SE * (C + OUT),
            transcendentals=N * OUT,
            bytes_accessed=N * C * L * elem + 4 * N * C,
        ),
    )(x, w1t, b1r, w2t, b2r)

    # Pass B: pure streaming multiply at HBM roofline.
    return pl.pallas_call(
        _se_scale_kernel,
        out_shape=jax.ShapeDtypeStruct((N, C, L), x.dtype),
        grid_spec=pltpu.PrefetchScalarGridSpec(
            num_scalar_prefetch=0,
            grid=grid,
            in_specs=[g_spec, x_spec],
            out_specs=x_spec,
        ),
        compiler_params=pltpu.CompilerParams(
            dimension_semantics=("parallel", "parallel"),
            vmem_limit_bytes=_VMEM_LIMIT_BYTES,
        ),
        cost_estimate=pl.CostEstimate(
            flops=N * C * L,
            transcendentals=0,
            bytes_accessed=2 * N * C * L * elem + 4 * N * C,
        ),
    )(gates, x)


def se_block(x, w1, b1, w2, b2, *, force_two_pass=False):
    """SEBlock forward (lengths=None path).

    x : (N, C, L)   activations (f32 or bf16; compute is done in f32)
    w1: (SE, C)     conv1 1x1 weight,  b1: (SE,)  conv1 bias
    w2: (OUT, SE)   conv2 1x1 weight,  b2: (OUT,) conv2 bias  (OUT == C)
    """
    N, C, L = x.shape
    SE = w1.shape[0]
    OUT = w2.shape[0]
    assert w1.shape == (SE, C) and w2.shape == (OUT, SE)
    assert OUT == C, "SEBlock gating requires out_channels == in_channels"

    # 1x1 Conv1d == dense.  Pre-transpose so the in-kernel matmuls are
    # (TN, C) @ (C, SE) and (TN, SE) @ (SE, OUT), batched over batch rows.
    w1t = jnp.asarray(w1, jnp.float32).T            # (C, SE)
    w2t = jnp.asarray(w2, jnp.float32).T            # (SE, OUT)
    b1r = jnp.asarray(b1, jnp.float32).reshape(1, SE)
    b2r = jnp.asarray(b2, jnp.float32).reshape(1, OUT)
    params = (w1t, b1r, w2t, b2r)

    elem = x.dtype.itemsize
    row_bytes = C * L * elem

    if force_two_pass or row_bytes > _SINGLE_PASS_ROW_LIMIT_BYTES:
        return _se_two_pass(x, *params)

    if L % _LANE == 0:
        # Already lane-dense: plain 3-D blocks, no in-kernel relayout needed.
        return _se_single_pass(x, *params, flat=False)

    tn_flat = _choose_tn(N, row_bytes, sublane_align=True)
    if tn_flat * row_bytes <= _SINGLE_PASS_ROW_LIMIT_BYTES:
        # Lane-dense flattened layout.  The in-kernel (TN, C*L)->(TN, C, L)
        # reshape is a VMEM-local relayout; if the local Mosaic toolchain
        # rejects it, fall back to plain 3-D blocking (still correct, just
        # lane-sparse stores for small L).
        try:
            return _se_single_pass(x, *params, flat=True)
        except Exception:  # pragma: no cover - toolchain-dependent fallback
            pass
    return _se_single_pass(x, *params, flat=False)


# --------------------------------------------------------------------------
# Pure-JAX reference (mirrors the PyTorch module, lengths=None path).
# --------------------------------------------------------------------------
def se_block_reference(x, w1, b1, w2, b2):
    s = jnp.mean(x, axis=2)                                   # (N, C)
    z = jnp.maximum(s @ w1.T + b1[None, :], 0.0)              # (N, SE)
    g = jax.nn.sigmoid(z @ w2.T + b2[None, :])                # (N, OUT)
    return g[:, :, None] * x


if __name__ == "__main__":
    key = jax.random.PRNGKey(0)
    kx1, kx2, kx3, k1, k2, k3, k4 = jax.random.split(key, 7)

    C, SE = 16, 8
    w1 = 0.1 * jax.random.normal(k1, (SE, C), dtype=jnp.float32)
    b1 = 0.1 * jax.random.normal(k2, (SE,), dtype=jnp.float32)
    w2 = 0.1 * jax.random.normal(k3, (C, SE), dtype=jnp.float32)
    b2 = 0.1 * jax.random.normal(k4, (C,), dtype=jnp.float32)

    def check(x, **kw):
        out = jax.block_until_ready(se_block(x, w1, b1, w2, b2, **kw))
        ref = se_block_reference(x, w1, b1, w2, b2)
        assert out.shape == x.shape and out.dtype == x.dtype
        assert jnp.allclose(out, ref, atol=1e-5, rtol=1e-5), "mismatch vs reference"

    # 1) Small L (not a multiple of 128): flattened lane-dense single-pass path.
    check(jax.random.normal(kx1, (2, C, 16), dtype=jnp.float32))
    # 2) Lane-dense L: plain 3-D single-pass path, multiple batch rows per step.
    check(jax.random.normal(kx2, (4, C, 256), dtype=jnp.float32))
    # 3) Large-L structure: two-pass (pool/gate + streaming scale), forced at a
    #    small shape; L=300 also exercises the ragged last L-tile masking.
    check(jax.random.normal(kx3, (2, C, 300), dtype=jnp.float32),
          force_two_pass=True)

    print("KERNEL_OK")
</pallas_src>

<mosaic_0001>
module attributes {stable_mosaic.version = 11 : i64} {
  func.func @_se_kernel_flat(%arg0: i32, %arg1: memref<2x256xf32, #tpu.memory_space<vmem>>, %arg2: memref<16x8xf32, #tpu.memory_space<vmem>>, %arg3: memref<1x8xf32, #tpu.memory_space<vmem>>, %arg4: memref<8x16xf32, #tpu.memory_space<vmem>>, %arg5: memref<1x16xf32, #tpu.memory_space<vmem>>, %arg6: memref<2x256xf32, #tpu.memory_space<vmem>>) attributes {dimension_semantics = [#tpu.dimension_semantics<parallel>], iteration_bounds = array<i64: 1>, scalar_prefetch = 0 : i64, scratch_operands = 0 : i64, tpu.core_type = #tpu.core_type<tc>, window_params = [{transform_indices = @transform_0, window_bounds = array<i64: 2, 256>}, {pipeline_mode = #tpu.pipeline_mode<synchronous>, transform_indices = @transform_1, window_bounds = array<i64: 16, 8>}, {pipeline_mode = #tpu.pipeline_mode<synchronous>, transform_indices = @transform_2, window_bounds = array<i64: 1, 8>}, {pipeline_mode = #tpu.pipeline_mode<synchronous>, transform_indices = @transform_3, window_bounds = array<i64: 8, 16>}, {pipeline_mode = #tpu.pipeline_mode<synchronous>, transform_indices = @transform_4, window_bounds = array<i64: 1, 16>}, {transform_indices = @transform_5, window_bounds = array<i64: 2, 256>}]} {
    %c0 = arith.constant 0 : index
    %c0_0 = arith.constant 0 : index
    %0 = vector.load %arg1[%c0, %c0_0] : memref<2x256xf32, #tpu.memory_space<vmem>>, vector<2x256xf32>
    %1 = vector.shape_cast %0 : vector<2x256xf32> to vector<2x16x16xf32>
    %cst = arith.constant dense<0.000000e+00> : vector<2x16xf32>
    %2 = vector.multi_reduction <add>, %1, %cst [2] : vector<2x16x16xf32> to vector<2x16xf32>
    %cst_1 = arith.constant 6.250000e-02 : f32
    %3 = vector.broadcast %cst_1 : f32 to vector<2x16xf32>
    %4 = arith.mulf %2, %3 : vector<2x16xf32>
    %c0_2 = arith.constant 0 : index
    %c0_3 = arith.constant 0 : index
    %5 = vector.load %arg2[%c0_2, %c0_3] : memref<16x8xf32, #tpu.memory_space<vmem>>, vector<16x8xf32>
    %cst_4 = arith.constant dense<0.000000e+00> : vector<2x8xf32>
    %6 = tpu.matmul %4, %5, %cst_4 {dimension_numbers = #tpu.dot_dimension_numbers<[1], [0], [0], [1], [0, 0, 1, 1], [], []>} : vector<2x16xf32>, vector<16x8xf32>, vector<2x8xf32> -> vector<2x8xf32>
    %c0_5 = arith.constant 0 : index
    %c0_6 = arith.constant 0 : index
    %7 = vector.load %arg3[%c0_5, %c0_6] : memref<1x8xf32, #tpu.memory_space<vmem>>, vector<1x8xf32>
    %8 = vector.broadcast %7 : vector<1x8xf32> to vector<2x8xf32>
    %9 = arith.addf %6, %8 : vector<2x8xf32>
    %cst_7 = arith.constant 0.000000e+00 : f32
    %10 = vector.broadcast %cst_7 : f32 to vector<2x8xf32>
    %11 = arith.maximumf %9, %10 : vector<2x8xf32>
    %c0_8 = arith.constant 0 : index
    %c0_9 = arith.constant 0 : index
    %12 = vector.load %arg4[%c0_8, %c0_9] : memref<8x16xf32, #tpu.memory_space<vmem>>, vector<8x16xf32>
    %cst_10 = arith.constant dense<0.000000e+00> : vector<2x16xf32>
    %13 = tpu.matmul %11, %12, %cst_10 {dimension_numbers = #tpu.dot_dimension_numbers<[1], [0], [0], [1], [0, 0, 1, 1], [], []>} : vector<2x8xf32>, vector<8x16xf32>, vector<2x16xf32> -> vector<2x16xf32>
    %c0_11 = arith.constant 0 : index
    %c0_12 = arith.constant 0 : index
    %14 = vector.load %arg5[%c0_11, %c0_12] : memref<1x16xf32, #tpu.memory_space<vmem>>, vector<1x16xf32>
    %15 = vector.broadcast %14 : vector<1x16xf32> to vector<2x16xf32>
    %16 = arith.addf %13, %15 : vector<2x16xf32>
    %17 = arith.negf %16 : vector<2x16xf32>
    %18 = math.exp %17 : vector<2x16xf32>
    %cst_13 = arith.constant 1.000000e+00 : f32
    %19 = vector.broadcast %cst_13 : f32 to vector<2x16xf32>
    %20 = arith.addf %19, %18 : vector<2x16xf32>
    %21 = arith.divf %19, %20 : vector<2x16xf32>
    %22 = vector.shape_cast %21 : vector<2x16xf32> to vector<2x16x1xf32>
    %23 = vector.broadcast %22 : vector<2x16x1xf32> to vector<2x16x16xf32>
    %24 = arith.mulf %23, %1 : vector<2x16x16xf32>
    %25 = vector.shape_cast %24 : vector<2x16x16xf32> to vector<2x256xf32>
    %c0_14 = arith.constant 0 : index
    %c0_15 = arith.constant 0 : index
    %26 = vector.load %arg6[%c0_14, %c0_15] : memref<2x256xf32, #tpu.memory_space<vmem>>, vector<2x256xf32>
    tpu.vector_store %arg6[%c0_14, %c0_15], %25 {strides = array<i32>} : memref<2x256xf32, #tpu.memory_space<vmem>>, vector<2x256xf32>,
    return
  }
  func.func @transform_0(%arg0: i32) -> (i32, i32) {
    %c0_i32 = arith.constant 0 : i32
    %c0_i32_0 = arith.constant 0 : i32
    return %arg0, %c0_i32 : i32, i32
  }
  func.func @transform_1(%arg0: i32) -> (i32, i32) {
    %c0_i32 = arith.constant 0 : i32
    %c0_i32_0 = arith.constant 0 : i32
    %c0_i32_1 = arith.constant 0 : i32
    return %c0_i32, %c0_i32_0 : i32, i32
  }
  func.func @transform_2(%arg0: i32) -> (i32, i32) {
    %c0_i32 = arith.constant 0 : i32
    %c0_i32_0 = arith.constant 0 : i32
    %c0_i32_1 = arith.constant 0 : i32
    return %c0_i32, %c0_i32_0 : i32, i32
  }
  func.func @transform_3(%arg0: i32) -> (i32, i32) {
    %c0_i32 = arith.constant 0 : i32
    %c0_i32_0 = arith.constant 0 : i32
    %c0_i32_1 = arith.constant 0 : i32
    return %c0_i32, %c0_i32_0 : i32, i32
  }
  func.func @transform_4(%arg0: i32) -> (i32, i32) {
    %c0_i32 = arith.constant 0 : i32
    %c0_i32_0 = arith.constant 0 : i32
    %c0_i32_1 = arith.constant 0 : i32
    return %c0_i32, %c0_i32_0 : i32, i32
  }
  func.func @transform_5(%arg0: i32) -> (i32, i32) {
    %c0_i32 = arith.constant 0 : i32
    %c0_i32_0 = arith.constant 0 : i32
    return %arg0, %c0_i32 : i32, i32
  }
}

module attributes {stable_mosaic.version = 11 : i64} {
  func.func @_se_kernel_3d(%arg0: i32, %arg1: memref<2x16x16xf32, #tpu.memory_space<vmem>>, %arg2: memref<16x8xf32, #tpu.memory_space<vmem>>, %arg3: memref<1x8xf32, #tpu.memory_space<vmem>>, %arg4: memref<8x16xf32, #tpu.memory_space<vmem>>, %arg5: memref<1x16xf32, #tpu.memory_space<vmem>>, %arg6: memref<2x16x16xf32, #tpu.memory_space<vmem>>) attributes {dimension_semantics = [#tpu.dimension_semantics<parallel>], iteration_bounds = array<i64: 1>, scalar_prefetch = 0 : i64, scratch_operands = 0 : i64, tpu.core_type = #tpu.core_type<tc>, window_params = [{transform_indices = @transform_0, window_bounds = array<i64: 2, 16, 16>}, {pipeline_mode = #tpu.pipeline_mode<synchronous>, transform_indices = @transform_1, window_bounds = array<i64: 16, 8>}, {pipeline_mode = #tpu.pipeline_mode<synchronous>, transform_indices = @transform_2, window_bounds = array<i64: 1, 8>}, {pipeline_mode = #tpu.pipeline_mode<synchronous>, transform_indices = @transform_3, window_bounds = array<i64: 8, 16>}, {pipeline_mode = #tpu.pipeline_mode<synchronous>, transform_indices = @transform_4, window_bounds = array<i64: 1, 16>}, {transform_indices = @transform_5, window_bounds = array<i64: 2, 16, 16>}]} {
    %c0 = arith.constant 0 : index
    %c0_0 = arith.constant 0 : index
    %c0_1 = arith.constant 0 : index
    %0 = vector.load %arg1[%c0, %c0_0, %c0_1] : memref<2x16x16xf32, #tpu.memory_space<vmem>>, vector<2x16x16xf32>
    %cst = arith.constant dense<0.000000e+00> : vector<2x16xf32>
    %1 = vector.multi_reduction <add>, %0, %cst [2] : vector<2x16x16xf32> to vector<2x16xf32>
    %cst_2 = arith.constant 6.250000e-02 : f32
    %2 = vector.broadcast %cst_2 : f32 to vector<2x16xf32>
    %3 = arith.mulf %1, %2 : vector<2x16xf32>
    %c0_3 = arith.constant 0 : index
    %c0_4 = arith.constant 0 : index
    %4 = vector.load %arg2[%c0_3, %c0_4] : memref<16x8xf32, #tpu.memory_space<vmem>>, vector<16x8xf32>
    %cst_5 = arith.constant dense<0.000000e+00> : vector<2x8xf32>
    %5 = tpu.matmul %3, %4, %cst_5 {dimension_numbers = #tpu.dot_dimension_numbers<[1], [0], [0], [1], [0, 0, 1, 1], [], []>} : vector<2x16xf32>, vector<16x8xf32>, vector<2x8xf32> -> vector<2x8xf32>
    %c0_6 = arith.constant 0 : index
    %c0_7 = arith.constant 0 : index
    %6 = vector.load %arg3[%c0_6, %c0_7] : memref<1x8xf32, #tpu.memory_space<vmem>>, vector<1x8xf32>
    %7 = vector.broadcast %6 : vector<1x8xf32> to vector<2x8xf32>
    %8 = arith.addf %5, %7 : vector<2x8xf32>
    %cst_8 = arith.constant 0.000000e+00 : f32
    %9 = vector.broadcast %cst_8 : f32 to vector<2x8xf32>
    %10 = arith.maximumf %8, %9 : vector<2x8xf32>
    %c0_9 = arith.constant 0 : index
    %c0_10 = arith.constant 0 : index
    %11 = vector.load %arg4[%c0_9, %c0_10] : memref<8x16xf32, #tpu.memory_space<vmem>>, vector<8x16xf32>
    %cst_11 = arith.constant dense<0.000000e+00> : vector<2x16xf32>
    %12 = tpu.matmul %10, %11, %cst_11 {dimension_numbers = #tpu.dot_dimension_numbers<[1], [0], [0], [1], [0, 0, 1, 1], [], []>} : vector<2x8xf32>, vector<8x16xf32>, vector<2x16xf32> -> vector<2x16xf32>
    %c0_12 = arith.constant 0 : index
    %c0_13 = arith.constant 0 : index
    %13 = vector.load %arg5[%c0_12, %c0_13] : memref<1x16xf32, #tpu.memory_space<vmem>>, vector<1x16xf32>
    %14 = vector.broadcast %13 : vector<1x16xf32> to vector<2x16xf32>
    %15 = arith.addf %12, %14 : vector<2x16xf32>
    %16 = arith.negf %15 : vector<2x16xf32>
    %17 = math.exp %16 : vector<2x16xf32>
    %cst_14 = arith.constant 1.000000e+00 : f32
    %18 = vector.broadcast %cst_14 : f32 to vector<2x16xf32>
    %19 = arith.addf %18, %17 : vector<2x16xf32>
    %20 = arith.divf %18, %19 : vector<2x16xf32>
    %21 = vector.shape_cast %20 : vector<2x16xf32> to vector<2x16x1xf32>
    %22 = vector.broadcast %21 : vector<2x16x1xf32> to vector<2x16x16xf32>
    %23 = arith.mulf %22, %0 : vector<2x16x16xf32>
    %c0_15 = arith.constant 0 : index
    %c0_16 = arith.constant 0 : index
    %c0_17 = arith.constant 0 : index
    %24 = vector.load %arg6[%c0_15, %c0_16, %c0_17] : memref<2x16x16xf32, #tpu.memory_space<vmem>>, vector<2x16x16xf32>
    tpu.vector_store %arg6[%c0_15, %c0_16, %c0_17], %23 {strides = array<i32>} : memref<2x16x16xf32, #tpu.memory_space<vmem>>, vector<2x16x16xf32>,
    return
  }
  func.func @transform_0(%arg0: i32) -> (i32, i32, i32) {
    %c0_i32 = arith.constant 0 : i32
    %c0_i32_0 = arith.constant 0 : i32
    %c0_i32_1 = arith.constant 0 : i32
    return %arg0, %c0_i32, %c0_i32_0 : i32, i32, i32
  }
  func.func @transform_1(%arg0: i32) -> (i32, i32) {
    %c0_i32 = arith.constant 0 : i32
    %c0_i32_0 = arith.constant 0 : i32
    %c0_i32_1 = arith.constant 0 : i32
    return %c0_i32, %c0_i32_0 : i32, i32
  }
  func.func @transform_2(%arg0: i32) -> (i32, i32) {
    %c0_i32 = arith.constant 0 : i32
    %c0_i32_0 = arith.constant 0 : i32
    %c0_i32_1 = arith.constant 0 : i32
    return %c0_i32, %c0_i32_0 : i32, i32
  }
  func.func @transform_3(%arg0: i32) -> (i32, i32) {
    %c0_i32 = arith.constant 0 : i32
    %c0_i32_0 = arith.constant 0 : i32
    %c0_i32_1 = arith.constant 0 : i32
    return %c0_i32, %c0_i32_0 : i32, i32
  }
  func.func @transform_4(%arg0: i32) -> (i32, i32) {
    %c0_i32 = arith.constant 0 : i32
    %c0_i32_0 = arith.constant 0 : i32
    %c0_i32_1 = arith.constant 0 : i32
    return %c0_i32, %c0_i32_0 : i32, i32
  }
  func.func @transform_5(%arg0: i32) -> (i32, i32, i32) {
    %c0_i32 = arith.constant 0 : i32
    %c0_i32_0 = arith.constant 0 : i32
    %c0_i32_1 = arith.constant 0 : i32
    return %arg0, %c0_i32, %c0_i32_0 : i32, i32, i32
  }
}

</mosaic_0001>

<llo_original>
// kernel: tpu_custom_call.1
$region0: #{tpu_custom_call.1}
  #allocation0 [shape = 'u32[]', space=smem, size = 0x4, offset = 0x4, fixed_abs, tag = 'smem constant byte address 0x4 - core index']
  #allocation1 [shape = 'u32[144,128]{1,0:T(1,128)}', space=vmem, size = 0x12000, scoped, tag = 'internal scratch']
  %s0 = inlined_call_operand.vmem [shape: f32[2,256], index: 0, kind: input, shape index: {}]
  %s1 = inlined_call_operand.vmem [shape: f32[16,8], index: 1, kind: input, shape index: {}]
  %s2 = inlined_call_operand.vmem [shape: f32[1,8], index: 2, kind: input, shape index: {}]
  %s3 = inlined_call_operand.vmem [shape: f32[8,16], index: 3, kind: input, shape index: {}]
  %s4 = inlined_call_operand.vmem [shape: f32[1,16], index: 4, kind: input, shape index: {}]
  %s5 = inlined_call_operand.hbm [shape: f32[2,256], index: 5, kind: output, shape index: {}]
  %s6 = sld [smem:[#allocation0]]
  $region30: #{tpu_custom_call.1} parent=0
    _
  %s8 = ssub.s32 1, %s6
  %s9 = scalar_select 0, %s8, %s6
  $region1: #{tpu_custom_call.1} parent=0
    #allocation2 [shape = 'u8[2048]{0}', space=vmem, size = 0x800, scoped, tag = 'output window, operand 0, single buffered']
    #allocation3 [shape = 's32[1]{0}', space=sflag, size = 0x4, scoped, tag = 'scoped memory for tpu_custom_call.1']
    %10 = vsyncpa [#allocation3], 0
    // Predicated region
    $region2: #{tpu_custom_call.1} parent=1 // pred_check
      _
    $region3: #{tpu_custom_call.1} parent=1 // pred_check_branch
      %12 = sbr.rel (0) target = $region5
    $region4: #{tpu_custom_call.1} parent=1 // pred_region
      _
    $region5: #{tpu_custom_call.1} parent=1 // pred_fallthru
      _
    // Predicated region
    $region6: #{tpu_custom_call.1} parent=1 // pred_check
      _
    $region7: #{tpu_custom_call.1} parent=1 // pred_check_branch
      %14 = sbr.rel (0) target = $region9
    $region8: #{tpu_custom_call.1} parent=1 // pred_region
      _
    $region9: #{tpu_custom_call.1} parent=1 // pred_fallthru
      _
    // Predicated region
    $region10: #{tpu_custom_call.1} parent=1 // pred_check
      _
    $region11: #{tpu_custom_call.1} parent=1 // pred_check_branch
      %16 = sbr.rel (0) target = $region13
    $region12: #{tpu_custom_call.1} parent=1 // pred_region
      _
    $region13: #{tpu_custom_call.1} parent=1 // pred_fallthru
      _
    // Predicated region
    $region14: #{tpu_custom_call.1} parent=1 // pred_check
      _
    $region15: #{tpu_custom_call.1} parent=1 // pred_check_branch
      %18 = sbr.rel (0) target = $region17
    $region16: #{tpu_custom_call.1} parent=1 // pred_region
      _
    $region17: #{tpu_custom_call.1} parent=1 // pred_fallthru
      _
    // Predicated region
    $region18: #{tpu_custom_call.1} parent=1 // pred_check
      _
    $region19: #{tpu_custom_call.1} parent=1 // pred_check_branch
      %20 = sbr.rel (0) target = $region21
    $region20: #{tpu_custom_call.1} parent=1 // pred_region
      _
    $region21: #{tpu_custom_call.1} parent=1 // pred_fallthru
      _
    %v21 = vld [vmem:[%s0] sm:$0xf]
    %v23 = vrot.slane %v21, 2
    %25 = vrot.lane.b32.xlu0 %v21, 112
    %v26 = vpop.permute.xlu0 %25
    %v27 = vrot.slane %v26, 2
    %29 = vrot.lane.b32.xlu0 %v21, 96
    %v30 = vpop.permute.xlu0 %29
    %v31 = vrot.slane %v30, 2
    %33 = vrot.lane.b32.xlu0 %v21, 80
    %v34 = vpop.permute.xlu0 %33
    %v35 = vrot.slane %v34, 2
    %37 = vrot.lane.b32.xlu0 %v21, 64
    %v38 = vpop.permute.xlu0 %37
    %v39 = vrot.slane %v38, 2
    %41 = vrot.lane.b32.xlu0 %v21, 48
    %v42 = vpop.permute.xlu0 %41
    %v43 = vrot.slane %v42, 2
    %45 = vrot.lane.b32.xlu0 %v21, 32
    %v46 = vpop.permute.xlu0 %45
    %v47 = vrot.slane %v46, 2
    %49 = vrot.lane.b32.xlu0 %v21, 16
    %v50 = vpop.permute.xlu0 %49
    %v51 = vrot.slane %v50, 2
    %v60 = vcombine.low %v21, %v26
    %v62 = vunpack.c.l.s4 1934713408
    %v63 = vunpack.c.0.s8 %v62
    %v64 = vlaneseq
    %v65 = vshrl.u32 %v64, 7
    %v66 = vsub.s32 %v63, %v65
    %v67 = vrot.slane %v60, %v66
    %v68 = vcombine.high %v67, 0.0
    %v69 = vcombine.low %v30, %v34
    %v71 = vunpack.c.l.s4 1934713408
    %v72 = vunpack.c.0.s8 %v71
    %v73 = vlaneseq
    %v74 = vshrl.u32 %v73, 7
    %v75 = vsub.s32 %v72, %v74
    %v76 = vrot.slane %v69, %v75
    %v77 = vcombine.high %v76, 0.0
    %v78 = vcombine.low %v38, %v42
    %v80 = vunpack.c.l.s4 1934713408
    %v81 = vunpack.c.0.s8 %v80
    %v82 = vlaneseq
    %v83 = vshrl.u32 %v82, 7
    %v84 = vsub.s32 %v81, %v83
    %v85 = vrot.slane %v78, %v84
    %v86 = vcombine.high %v85, 0.0
    %v87 = vcombine.low %v46, %v50
    %v89 = vunpack.c.l.s4 1934713408
    %v90 = vunpack.c.0.s8 %v89
    %v91 = vlaneseq
    %v92 = vshrl.u32 %v91, 7
    %v93 = vsub.s32 %v90, %v92
    %v94 = vrot.slane %v87, %v93
    %v95 = vcombine.high %v94, 0.0
    %v96 = vcombine.low %v23, %v27
    %v98 = vunpack.c.l.s4 1934713408
    %v99 = vunpack.c.0.s8 %v98
    %v100 = vlaneseq
    %v101 = vshrl.u32 %v100, 7
    %v102 = vsub.s32 %v99, %v101
    %v103 = vrot.slane %v96, %v102
    %v104 = vcombine.high %v103, 0.0
    %v105 = vcombine.low %v31, %v35
    %v107 = vunpack.c.l.s4 1934713408
    %v108 = vunpack.c.0.s8 %v107
    %v109 = vlaneseq
    %v110 = vshrl.u32 %v109, 7
    %v111 = vsub.s32 %v108, %v110
    %v112 = vrot.slane %v105, %v111
    %v113 = vcombine.high %v112, 0.0
    %v114 = vcombine.low %v39, %v43
    %v116 = vunpack.c.l.s4 1934713408
    %v117 = vunpack.c.0.s8 %v116
    %v118 = vlaneseq
    %v119 = vshrl.u32 %v118, 7
    %v120 = vsub.s32 %v117, %v119
    %v121 = vrot.slane %v114, %v120
    %v122 = vcombine.high %v121, 0.0
    %v123 = vcombine.low %v47, %v51
    %v125 = vunpack.c.l.s4 1934713408
    %v126 = vunpack.c.0.s8 %v125
    %v127 = vlaneseq
    %v128 = vshrl.u32 %v127, 7
    %v129 = vsub.s32 %v126, %v128
    %v130 = vrot.slane %v123, %v129
    %v131 = vcombine.high %v130, 0.0
    %v148 = vcombine.low %v67, %v76
    %v149 = vcombine.low %v85, %v94
    %v151 = vunpack.c.l.s4 1983009808
    %v152 = vunpack.c.0.s8 %v151
    %v153 = vlaneseq
    %v154 = vshrl.u32 %v153, 7
    %v155 = vsub.s32 %v152, %v154
    %v156 = vrot.slane %v148, %v155
    %v158 = vunpack.c.l.s4 1983009808
    %v159 = vunpack.c.0.s8 %v158
    %v160 = vlaneseq
    %v161 = vshrl.u32 %v160, 7
    %v162 = vsub.s32 %v159, %v161
    %v163 = vrot.slane %v149, %v162
    %v164 = vcombine.low %v156, %v163
    %v165 = vcombine.low %v103, %v112
    %v166 = vcombine.low %v121, %v130
    %v168 = vunpack.c.l.s4 1983009808
    %v169 = vunpack.c.0.s8 %v168
    %v170 = vlaneseq
    %v171 = vshrl.u32 %v170, 7
    %v172 = vsub.s32 %v169, %v171
    %v173 = vrot.slane %v165, %v172
    %v175 = vunpack.c.l.s4 1983009808
    %v176 = vunpack.c.0.s8 %v175
    %v177 = vlaneseq
    %v178 = vshrl.u32 %v177, 7
    %v179 = vsub.s32 %v176, %v178
    %v180 = vrot.slane %v166, %v179
    %v181 = vcombine.low %v173, %v180
    %v182 = vcombine.low %v68, %v77
    %v183 = vcombine.low %v86, %v95
    %v185 = vunpack.c.l.s4 1983009808
    %v186 = vunpack.c.0.s8 %v185
    %v187 = vlaneseq
    %v188 = vshrl.u32 %v187, 7
    %v189 = vsub.s32 %v186, %v188
    %v190 = vrot.slane %v182, %v189
    %v192 = vunpack.c.l.s4 1983009808
    %v193 = vunpack.c.0.s8 %v192
    %v194 = vlaneseq
    %v195 = vshrl.u32 %v194, 7
    %v196 = vsub.s32 %v193, %v195
    %v197 = vrot.slane %v183, %v196
    %v198 = vcombine.low %v190, %v197
    %v199 = vcombine.low %v104, %v113
    %v200 = vcombine.low %v122, %v131
    %v202 = vunpack.c.l.s4 1983009808
    %v203 = vunpack.c.0.s8 %v202
    %v204 = vlaneseq
    %v205 = vshrl.u32 %v204, 7
    %v206 = vsub.s32 %v203, %v205
    %v207 = vrot.slane %v199, %v206
    %v209 = vunpack.c.l.s4 1983009808
    %v210 = vunpack.c.0.s8 %v209
    %v211 = vlaneseq
    %v212 = vshrl.u32 %v211, 7
    %v213 = vsub.s32 %v210, %v212
    %v214 = vrot.slane %v200, %v213
    %v215 = vcombine.low %v207, %v214
    %vm220 = vcmask 130048
    %v221 = vsel %vm220, %v164, 0.0
    %222 = vadd.xlane.f32.xlu0 %v221
    %v223 = vpop.xlane.xlu0 %222
    %v224 = vsel %vm220, %v181, 0.0
    %225 = vadd.xlane.f32.xlu0 %v224
    %v226 = vpop.xlane.xlu0 %225
    %v227 = vsel %vm220, %v198, 0.0
    %228 = vadd.xlane.f32.xlu0 %v227
    %v229 = vpop.xlane.xlu0 %228
    %v230 = vsel %vm220, %v215, 0.0
    %231 = vadd.xlane.f32.xlu0 %v230
    %v232 = vpop.xlane.xlu0 %231
    %v233 = vmul.f32 %v223, 0.0625
    %v234 = vmul.f32 %v226, 0.0625
    %v235 = vmul.f32 %v229, 0.0625
    %v236 = vmul.f32 %v232, 0.0625
    %v237 = vld [vmem:[%s1] sm:$0xff]
    %v238 = vld [vmem:[%s1 + $0x8] sm:$0xff]
    %v239 = vld [vmem:[%s2] sm:$0x1]
    %v241 = vlaneseq
    %v242 = vshrl.u32 %v241, 7
    %v243 = vsub.s32 0, %v242
    %v244 = vrot.slane %v239, %v243
    %v250 = vlaneseq
    %v251 = vand.u32 %v250, 127
    %v252 = vlaneseq
    %v253 = vshrl.u32 %v252, 7
    %v254 = vsub.s32 %v251, %v253
    %v255 = vrot.slane %v233, %v254
    %v256 = vadd.s32 %v251, 4294967288
    %v257 = vlaneseq
    %v258 = vshrl.u32 %v257, 7
    %v259 = vsub.s32 %v256, %v258
    %v260 = vrot.slane %v234, %v259
    %vm261 = vcmask 130112
    %v262 = vsel %vm261, %v260, %v255
    %v263 = vlaneseq
    %v264 = vshrl.u32 %v263, 7
    %v265 = vsub.s32 %v251, %v264
    %v266 = vrot.slane %v235, %v265
    %v267 = vlaneseq
    %v268 = vshrl.u32 %v267, 7
    %v269 = vsub.s32 %v256, %v268
    %v270 = vrot.slane %v236, %v269
    %v271 = vsel %vm261, %v270, %v266
    %vm272 = vcmask 1041409
    %v273 = vsel %vm272, %v271, %v262
    %v274 = vsel %vm220, %v273, 0
    %276 = vmatprep.subr.mxu0 0.0
    %277 = vmatpush1.msra.mxu0 %v237
    %278 = vmatprep.subr.mxu0 0.0
    %279 = vmatpush1.msra.mxu0 %v238
    %280 = vmatprep.subr.mxu0 0.0
    %281 = vmatpush1.msra.mxu0 0.0
    %282 = vmatprep.subr.mxu0 0.0
    %283 = vmatpush1.msra.mxu0 0.0
    %284 = vmatprep.subr.mxu0 0.0
    %285 = vmatpush1.msra.mxu0 0.0
    %286 = vmatprep.subr.mxu0 0.0
    %287 = vmatpush1.msra.mxu0 0.0
    %288 = vmatprep.subr.mxu0 0.0
    %289 = vmatpush1.msra.mxu0 0.0
    %290 = vmatprep.subr.mxu0 0.0
    %291 = vmatpush1.msra.mxu0 0.0
    %292 = vmatprep.subr.mxu0 0.0
    %293 = vmatpush1.msra.mxu0 0.0
    %294 = vmatprep.subr.mxu0 0.0
    %295 = vmatpush1.msra.mxu0 0.0
    %296 = vmatprep.subr.mxu0 0.0
    %297 = vmatpush1.msra.mxu0 0.0
    %298 = vmatprep.subr.mxu0 0.0
    %299 = vmatpush1.msra.mxu0 0.0
    %300 = vmatprep.subr.mxu0 0.0
    %301 = vmatpush1.msra.mxu0 0.0
    %302 = vmatprep.subr.mxu0 0.0
    %303 = vmatpush1.msra.mxu0 0.0
    %304 = vmatprep.subr.mxu0 0.0
    %305 = vmatpush1.msra.mxu0 0.0
    %306 = vmatprep.subr.mxu0 0.0
    %307 = vmatpush1.msra.mxu0 0.0
    %308 = vmatprep.subr.mxu0 0.0
    %309 = vmatpush1.msra.mxu0 0.0
    %310 = vmatprep.subr.mxu0 0.0
    %311 = vmatpush1.msra.mxu0 0.0
    %312 = vmatprep.subr.mxu0 0.0
    %313 = vmatpush1.msra.mxu0 0.0
    %314 = vmatprep.subr.mxu0 0.0
    %315 = vmatpush1.msra.mxu0 0.0
    %316 = vmatprep.subr.mxu0 0.0
    %317 = vmatpush1.msra.mxu0 0.0
    %318 = vmatprep.subr.mxu0 0.0
    %319 = vmatpush1.msra.mxu0 0.0
    %320 = vmatprep.subr.mxu0 0.0
    %321 = vmatpush1.msra.mxu0 0.0
    %322 = vmatprep.subr.mxu0 0.0
    %323 = vmatpush1.msra.mxu0 0.0
    %324 = vmatprep.subr.mxu0 0.0
    %325 = vmatpush1.msra.mxu0 0.0
    %326 = vmatprep.subr.mxu0 0.0
    %327 = vmatpush1.msra.mxu0 0.0
    %328 = vmatprep.subr.mxu0 0.0
    %329 = vmatpush1.msra.mxu0 0.0
    %330 = vmatprep.subr.mxu0 0.0
    %331 = vmatpush1.msra.mxu0 0.0
    %332 = vmatprep.subr.mxu0 0.0
    %333 = vmatpush1.msra.mxu0 0.0
    %334 = vmatprep.subr.mxu0 0.0
    %335 = vmatpush1.msra.mxu0 0.0
    %336 = vmatprep.subr.mxu0 0.0
    %337 = vmatpush1.msra.mxu0 0.0
    %338 = vmatprep.subr.mxu0 0.0
    %339 = vmatpush1.msra.mxu0 0.0
    %340 = vmatprep.mubr.f32.mxu0 0.0
    %341 = vmatmul.mubr.f32.gmra.mrb[0].mxu0 %v274
    %v342 = vpop.f32.mrb[0].mxu0
    %v343 = vadd.f32 %v244, %v342
    %v344 = vpop.f32.mrb[0].mxu0
    %345 = vdwg.mxu0
    %v346 = vmax.f32 %v343, 0.0
    %v347 = vld [vmem:[%s3] sm:$0xff]
    %v348 = vld [vmem:[%s4] sm:$0x1]
    %v350 = vlaneseq
    %v351 = vshrl.u32 %v350, 7
    %v352 = vsub.s32 0, %v351
    %v353 = vrot.slane %v348, %v352
    %vm355 = vcmask 64512
    %v357 = vsel %vm355, %v346, 0
    %359 = vmatprep.subr.mxu0 0.0
    %360 = vmatpush1.msra.mxu0 %v347
    %361 = vmatprep.subr.mxu0 0.0
    %362 = vmatpush1.msra.mxu0 0.0
    %363 = vmatprep.subr.mxu0 0.0
    %364 = vmatpush1.msra.mxu0 0.0
    %365 = vmatprep.subr.mxu0 0.0
    %366 = vmatpush1.msra.mxu0 0.0
    %367 = vmatprep.subr.mxu0 0.0
    %368 = vmatpush1.msra.mxu0 0.0
    %369 = vmatprep.subr.mxu0 0.0
    %370 = vmatpush1.msra.mxu0 0.0
    %371 = vmatprep.subr.mxu0 0.0
    %372 = vmatpush1.msra.mxu0 0.0
    %373 = vmatprep.subr.mxu0 0.0
    %374 = vmatpush1.msra.mxu0 0.0
    %375 = vmatprep.subr.mxu0 0.0
    %376 = vmatpush1.msra.mxu0 0.0
    %377 = vmatprep.subr.mxu0 0.0
    %378 = vmatpush1.msra.mxu0 0.0
    %379 = vmatprep.subr.mxu0 0.0
    %380 = vmatpush1.msra.mxu0 0.0
    %381 = vmatprep.subr.mxu0 0.0
    %382 = vmatpush1.msra.mxu0 0.0
    %383 = vmatprep.subr.mxu0 0.0
    %384 = vmatpush1.msra.mxu0 0.0
    %385 = vmatprep.subr.mxu0 0.0
    %386 = vmatpush1.msra.mxu0 0.0
    %387 = vmatprep.subr.mxu0 0.0
    %388 = vmatpush1.msra.mxu0 0.0
    %389 = vmatprep.subr.mxu0 0.0
    %390 = vmatpush1.msra.mxu0 0.0
    %391 = vmatprep.subr.mxu0 0.0
    %392 = vmatpush1.msra.mxu0 0.0
    %393 = vmatprep.subr.mxu0 0.0
    %394 = vmatpush1.msra.mxu0 0.0
    %395 = vmatprep.subr.mxu0 0.0
    %396 = vmatpush1.msra.mxu0 0.0
    %397 = vmatprep.subr.mxu0 0.0
    %398 = vmatpush1.msra.mxu0 0.0
    %399 = vmatprep.subr.mxu0 0.0
    %400 = vmatpush1.msra.mxu0 0.0
    %401 = vmatprep.subr.mxu0 0.0
    %402 = vmatpush1.msra.mxu0 0.0
    %403 = vmatprep.subr.mxu0 0.0
    %404 = vmatpush1.msra.mxu0 0.0
    %405 = vmatprep.subr.mxu0 0.0
    %406 = vmatpush1.msra.mxu0 0.0
    %407 = vmatprep.subr.mxu0 0.0
    %408 = vmatpush1.msra.mxu0 0.0
    %409 = vmatprep.subr.mxu0 0.0
    %410 = vmatpush1.msra.mxu0 0.0
    %411 = vmatprep.subr.mxu0 0.0
    %412 = vmatpush1.msra.mxu0 0.0
    %413 = vmatprep.subr.mxu0 0.0
    %414 = vmatpush1.msra.mxu0 0.0
    %415 = vmatprep.subr.mxu0 0.0
    %416 = vmatpush1.msra.mxu0 0.0
    %417 = vmatprep.subr.mxu0 0.0
    %418 = vmatpush1.msra.mxu0 0.0
    %419 = vmatprep.subr.mxu0 0.0
    %420 = vmatpush1.msra.mxu0 0.0
    %421 = vmatprep.subr.mxu0 0.0
    %422 = vmatpush1.msra.mxu0 0.0
    %423 = vmatprep.mubr.f32.mxu0 0.0
    %424 = vmatmul.mubr.f32.gmra.mrb[0].mxu0 %v357
    %v425 = vpop.f32.mrb[0].mxu0
    %v426 = vadd.f32 %v353, %v425
    %v427 = vpop.f32.mrb[0].mxu0
    %428 = vdwg.mxu0
    %v429 = vxor.u32 %v426, 2147483648
    %v430 = vmul.f32 %v429, 1.442695
    %v431 = vpow.pop %v430
    %v432 = vadd.f32 %v431, 1.0
    %v433 = vrcp.pop %v432
    %v434 = vmul.f32 1.0, %v433
    %v435 = vlaneseq
    %v436 = vshrl.u32 %v435, 7
    %v437 = vsub.s32 0, %v436
    %v438 = vrot.slane %v434, %v437
    %440 = vbcast.lane.b32.xlu0 %v438, 256
    %v441 = vpop.permute.xlu0 %440
    %s443 = sor.u32 256, 8
    %444 = vbcast.lane.b32.xlu0 %v438, %s443
    %v445 = vpop.permute.xlu0 %444
    %v446 = vlaneseq
    %v447 = vshrl.u32 %v446, 7
    %v448 = vsub.s32 1, %v447
    %v449 = vrot.slane %v434, %v448
    %451 = vbcast.lane.b32.xlu0 %v449, 256
    %v452 = vpop.permute.xlu0 %451
    %s454 = sor.u32 256, 8
    %455 = vbcast.lane.b32.xlu0 %v449, %s454
    %v456 = vpop.permute.xlu0 %455
    %v457 = vmul.f32 %v441, %v164
    %v458 = vmul.f32 %v445, %v181
    %v459 = vmul.f32 %v452, %v198
    %v460 = vmul.f32 %v456, %v215
    %v461 = vcombine.high %v457, 0.0
    %v463 = vunpack.c.l.s4 1983009808
    %v464 = vunpack.c.0.s8 %v463
    %v465 = vlaneseq
    %v466 = vshrl.u32 %v465, 7
    %v467 = vsub.s32 %v464, %v466
    %v468 = vrot.slane %v457, %v467
    %v470 = vunpack.c.l.s4 1983009808
    %v471 = vunpack.c.0.s8 %v470
    %v472 = vlaneseq
    %v473 = vshrl.u32 %v472, 7
    %v474 = vsub.s32 %v471, %v473
    %v475 = vrot.slane %v461, %v474
    %v476 = vcombine.high %v459, 0.0
    %v478 = vunpack.c.l.s4 1983009808
    %v479 = vunpack.c.0.s8 %v478
    %v480 = vlaneseq
    %v481 = vshrl.u32 %v480, 7
    %v482 = vsub.s32 %v479, %v481
    %v483 = vrot.slane %v459, %v482
    %v485 = vunpack.c.l.s4 1983009808
    %v486 = vunpack.c.0.s8 %v485
    %v487 = vlaneseq
    %v488 = vshrl.u32 %v487, 7
    %v489 = vsub.s32 %v486, %v488
    %v490 = vrot.slane %v476, %v489
    %v491 = vcombine.low %v468, %v483
    %v492 = vcombine.high %v468, %v483
    %v494 = vunpack.c.l.s4 1934713408
    %v495 = vunpack.c.0.s8 %v494
    %v496 = vlaneseq
    %v497 = vshrl.u32 %v496, 7
    %v498 = vsub.s32 %v495, %v497
    %v499 = vrot.slane %v491, %v498
    %v501 = vunpack.c.l.s4 1934713408
    %v502 = vunpack.c.0.s8 %v501
    %v503 = vlaneseq
    %v504 = vshrl.u32 %v503, 7
    %v505 = vsub.s32 %v502, %v504
    %v506 = vrot.slane %v492, %v505
    %v507 = vcombine.low %v475, %v490
    %v508 = vcombine.high %v475, %v490
    %v510 = vunpack.c.l.s4 1934713408
    %v511 = vunpack.c.0.s8 %v510
    %v512 = vlaneseq
    %v513 = vshrl.u32 %v512, 7
    %v514 = vsub.s32 %v511, %v513
    %v515 = vrot.slane %v507, %v514
    %v517 = vunpack.c.l.s4 1934713408
    %v518 = vunpack.c.0.s8 %v517
    %v519 = vlaneseq
    %v520 = vshrl.u32 %v519, 7
    %v521 = vsub.s32 %v518, %v520
    %v522 = vrot.slane %v508, %v521
    %v523 = vcombine.high %v499, 0.0
    %v524 = vcombine.high %v506, 0.0
    %v525 = vcombine.high %v515, 0.0
    %v526 = vcombine.high %v522, 0.0
    %v527 = vcombine.high %v458, 0.0
    %v529 = vunpack.c.l.s4 1983009808
    %v530 = vunpack.c.0.s8 %v529
    %v531 = vlaneseq
    %v532 = vshrl.u32 %v531, 7
    %v533 = vsub.s32 %v530, %v532
    %v534 = vrot.slane %v458, %v533
    %v536 = vunpack.c.l.s4 1983009808
    %v537 = vunpack.c.0.s8 %v536
    %v538 = vlaneseq
    %v539 = vshrl.u32 %v538, 7
    %v540 = vsub.s32 %v537, %v539
    %v541 = vrot.slane %v527, %v540
    %v542 = vcombine.high %v460, 0.0
    %v544 = vunpack.c.l.s4 1983009808
    %v545 = vunpack.c.0.s8 %v544
    %v546 = vlaneseq
    %v547 = vshrl.u32 %v546, 7
    %v548 = vsub.s32 %v545, %v547
    %v549 = vrot.slane %v460, %v548
    %v551 = vunpack.c.l.s4 1983009808
    %v552 = vunpack.c.0.s8 %v551
    %v553 = vlaneseq
    %v554 = vshrl.u32 %v553, 7
    %v555 = vsub.s32 %v552, %v554
    %v556 = vrot.slane %v542, %v555
    %v557 = vcombine.low %v534, %v549
    %v558 = vcombine.high %v534, %v549
    %v560 = vunpack.c.l.s4 1934713408
    %v561 = vunpack.c.0.s8 %v560
    %v562 = vlaneseq
    %v563 = vshrl.u32 %v562, 7
    %v564 = vsub.s32 %v561, %v563
    %v565 = vrot.slane %v557, %v564
    %v567 = vunpack.c.l.s4 1934713408
    %v568 = vunpack.c.0.s8 %v567
    %v569 = vlaneseq
    %v570 = vshrl.u32 %v569, 7
    %v571 = vsub.s32 %v568, %v570
    %v572 = vrot.slane %v558, %v571
    %v573 = vcombine.low %v541, %v556
    %v574 = vcombine.high %v541, %v556
    %v576 = vunpack.c.l.s4 1934713408
    %v577 = vunpack.c.0.s8 %v576
    %v578 = vlaneseq
    %v579 = vshrl.u32 %v578, 7
    %v580 = vsub.s32 %v577, %v579
    %v581 = vrot.slane %v573, %v580
    %v583 = vunpack.c.l.s4 1934713408
    %v584 = vunpack.c.0.s8 %v583
    %v585 = vlaneseq
    %v586 = vshrl.u32 %v585, 7
    %v587 = vsub.s32 %v584, %v586
    %v588 = vrot.slane %v574, %v587
    %v589 = vcombine.high %v565, 0.0
    %v590 = vcombine.high %v572, 0.0
    %v591 = vcombine.high %v581, 0.0
    %v592 = vcombine.high %v588, 0.0
    %594 = vrot.lane.b32.xlu0 %v523, 16
    %v595 = vpop.permute.xlu0 %594
    %598 = vrot.lane.b32.xlu0 %v506, 32
    %v599 = vpop.permute.xlu0 %598
    %602 = vrot.lane.b32.xlu0 %v524, 48
    %v603 = vpop.permute.xlu0 %602
    %606 = vrot.lane.b32.xlu0 %v515, 64
    %v607 = vpop.permute.xlu0 %606
    %610 = vrot.lane.b32.xlu0 %v525, 80
    %v611 = vpop.permute.xlu0 %610
    %614 = vrot.lane.b32.xlu0 %v522, 96
    %v615 = vpop.permute.xlu0 %614
    %618 = vrot.lane.b32.xlu0 %v526, 112
    %v619 = vpop.permute.xlu0 %618
    %622 = vrot.lane.b32.xlu0 %v589, 16
    %v623 = vpop.permute.xlu0 %622
    %626 = vrot.lane.b32.xlu0 %v572, 32
    %v627 = vpop.permute.xlu0 %626
    %630 = vrot.lane.b32.xlu0 %v590, 48
    %v631 = vpop.permute.xlu0 %630
    %634 = vrot.lane.b32.xlu0 %v581, 64
    %v635 = vpop.permute.xlu0 %634
    %638 = vrot.lane.b32.xlu0 %v591, 80
    %v639 = vpop.permute.xlu0 %638
    %642 = vrot.lane.b32.xlu0 %v588, 96
    %v643 = vpop.permute.xlu0 %642
    %646 = vrot.lane.b32.xlu0 %v592, 112
    %v647 = vpop.permute.xlu0 %646
    %v649 = vsel %vm220, %v499, %v595
    %vm650 = vcmask 261120
    %v651 = vsel %vm650, %v649, %v599
    %vm652 = vcmask 392192
    %v653 = vsel %vm652, %v651, %v603
    %vm654 = vcmask 523264
    %v655 = vsel %vm654, %v653, %v607
    %vm656 = vcmask 654336
    %v657 = vsel %vm656, %v655, %v611
    %vm658 = vcmask 785408
    %v659 = vsel %vm658, %v657, %v615
    %vm660 = vcmask 916480
    %v661 = vsel %vm660, %v659, %v619
    %v662 = vsel %vm220, %v565, %v623
    %v663 = vsel %vm650, %v662, %v627
    %v664 = vsel %vm652, %v663, %v631
    %v665 = vsel %vm654, %v664, %v635
    %v666 = vsel %vm656, %v665, %v639
    %v667 = vsel %vm658, %v666, %v643
    %v668 = vsel %vm660, %v667, %v647
    %v671 = vcombine.low %v661, %v668
    %v673 = vunpack.c.l.s4 1983009808
    %v674 = vunpack.c.0.s8 %v673
    %v675 = vlaneseq
    %v676 = vshrl.u32 %v675, 7
    %v677 = vsub.s32 %v674, %v676
    %v678 = vrot.slane %v671, %v677
    %680 = vst [vmem:[#allocation2] sm:$0xf] %v678
    // Predicated region
    $region22: #{tpu_custom_call.1} parent=1 // pred_check
      _
    $region23: #{tpu_custom_call.1} parent=1 // pred_check_branch
      %682 = sbr.rel (0) target = $region25
    $region24: #{tpu_custom_call.1} parent=1 // pred_region
      %s684 = ssub.s32 64, 64
      %685 = vsyncadd [#allocation3], %s684
      %s687 = sshll.u32 [#allocation2], 4
      %s688 = int_to_ptr.vmem [resolvable:$true] %s687
      %690 = dma.vmem_to_hbm [thread:$0]  %s688, 64, %s5, [#allocation3]
    $region25: #{tpu_custom_call.1} parent=1 // pred_fallthru
      _
    // Predicated region
    $region26: #{tpu_custom_call.1} parent=1 // pred_check
      _
    $region27: #{tpu_custom_call.1} parent=1 // pred_check_branch
      %692 = sbr.rel (0) target = $region29
    $region28: #{tpu_custom_call.1} parent=1 // pred_region
      %693 = dma.done [#allocation3], 64
    $region29: #{tpu_custom_call.1} parent=1 // pred_fallthru
      _
    %694 = vsyncpa [#allocation3], 1

// kernel: tpu_custom_call.1
$region0: #{tpu_custom_call.1}
  #allocation0 [shape = 'u32[]', space=smem, size = 0x4, offset = 0x4, fixed_abs, tag = 'smem constant byte address 0x4 - core index']
  #allocation1 [shape = 'u32[144,128]{1,0:T(1,128)}', space=vmem, size = 0x12000, scoped, tag = 'internal scratch']
  %s0 = inlined_call_operand.hbm [shape: f32[2,16,16], index: 0, kind: input, shape index: {}]
  %s1 = inlined_call_operand.vmem [shape: f32[16,8], index: 1, kind: input, shape index: {}]
  %s2 = inlined_call_operand.vmem [shape: f32[1,8], index: 2, kind: input, shape index: {}]
  %s3 = inlined_call_operand.vmem [shape: f32[8,16], index: 3, kind: input, shape index: {}]
  %s4 = inlined_call_operand.vmem [shape: f32[1,16], index: 4, kind: input, shape index: {}]
  %s5 = inlined_call_operand.hbm [shape: f32[2,16,16], index: 5, kind: output, shape index: {}]
  %s6 = sld [smem:[#allocation0]]
  $region34: #{tpu_custom_call.1} parent=0
    _
  %s8 = ssub.s32 1, %s6
  %s9 = scalar_select 0, %s8, %s6
  $region1: #{tpu_custom_call.1} parent=0
    #allocation2 [shape = 'u8[16384]{0}', space=vmem, size = 0x4000, scoped, tag = 'input window, operand 0, single buffered']
    #allocation3 [shape = 's32[1]{0}', space=sflag, size = 0x4, scoped, tag = 'scoped memory for tpu_custom_call.1']
    #allocation4 [shape = 's32[1]{0}', space=sflag, size = 0x4, scoped, tag = 'scoped memory for tpu_custom_call.1']
    #allocation5 [shape = 'u8[16384]{0}', space=vmem, size = 0x4000, scoped, tag = 'output window, operand 0, single buffered']
    %10 = vsyncpa [#allocation3], 0
    %11 = vsyncpa [#allocation4], 0
    // Predicated region
    $region2: #{tpu_custom_call.1} parent=1 // pred_check
      _
    $region3: #{tpu_custom_call.1} parent=1 // pred_check_branch
      %13 = sbr.rel (0) target = $region5
    $region4: #{tpu_custom_call.1} parent=1 // pred_region
      %s15 = ssub.s32 512, 512
      %16 = vsyncadd [#allocation3], %s15
      %s17 = sshll.u32 [#allocation2], 4
      %s18 = int_to_ptr.vmem [resolvable:$true] %s17
      %23 = dma.hbm_to_vmem [thread:$0]  %s0, 512, %s18, [#allocation3], 128, 128, 8
    $region5: #{tpu_custom_call.1} parent=1 // pred_fallthru
      _
    // Predicated region
    $region6: #{tpu_custom_call.1} parent=1 // pred_check
      _
    $region7: #{tpu_custom_call.1} parent=1 // pred_check_branch
      %25 = sbr.rel (0) target = $region9
    $region8: #{tpu_custom_call.1} parent=1 // pred_region
      _
    $region9: #{tpu_custom_call.1} parent=1 // pred_fallthru
      _
    // Predicated region
    $region10: #{tpu_custom_call.1} parent=1 // pred_check
      _
    $region11: #{tpu_custom_call.1} parent=1 // pred_check_branch
      %27 = sbr.rel (0) target = $region13
    $region12: #{tpu_custom_call.1} parent=1 // pred_region
      _
    $region13: #{tpu_custom_call.1} parent=1 // pred_fallthru
      _
    // Predicated region
    $region14: #{tpu_custom_call.1} parent=1 // pred_check
      _
    $region15: #{tpu_custom_call.1} parent=1 // pred_check_branch
      %29 = sbr.rel (0) target = $region17
    $region16: #{tpu_custom_call.1} parent=1 // pred_region
      _
    $region17: #{tpu_custom_call.1} parent=1 // pred_fallthru
      _
    // Predicated region
    $region18: #{tpu_custom_call.1} parent=1 // pred_check
      _
    $region19: #{tpu_custom_call.1} parent=1 // pred_check_branch
      %31 = sbr.rel (0) target = $region21
    $region20: #{tpu_custom_call.1} parent=1 // pred_region
      _
    $region21: #{tpu_custom_call.1} parent=1 // pred_fallthru
      _
    // Predicated region
    $region22: #{tpu_custom_call.1} parent=1 // pred_check
      _
    $region23: #{tpu_custom_call.1} parent=1 // pred_check_branch
      %33 = sbr.rel (0) target = $region25
    $region24: #{tpu_custom_call.1} parent=1 // pred_region
      %34 = dma.done [#allocation3], 512
    $region25: #{tpu_custom_call.1} parent=1 // pred_fallthru
      _
    %v35 = vld [vmem:[#allocation2] sm:$0xff]
    %v36 = vld [vmem:[#allocation2 + $0x8] sm:$0xff]
    %v37 = vld [vmem:[#allocation2 + $0x10] sm:$0xff]
    %v38 = vld [vmem:[#allocation2 + $0x18] sm:$0xff]
    %vm39 = vcmask 130048
    %v40 = vsel %vm39, %v35, 0.0
    %41 = vadd.xlane.f32.xlu0 %v40
    %v42 = vpop.xlane.xlu0 %41
    %v43 = vsel %vm39, %v36, 0.0
    %44 = vadd.xlane.f32.xlu0 %v43
    %v45 = vpop.xlane.xlu0 %44
    %v46 = vsel %vm39, %v37, 0.0
    %47 = vadd.xlane.f32.xlu0 %v46
    %v48 = vpop.xlane.xlu0 %47
    %v49 = vsel %vm39, %v38, 0.0
    %50 = vadd.xlane.f32.xlu0 %v49
    %v51 = vpop.xlane.xlu0 %50
    %v52 = vmul.f32 %v42, 0.0625
    %v53 = vmul.f32 %v45, 0.0625
    %v54 = vmul.f32 %v48, 0.0625
    %v55 = vmul.f32 %v51, 0.0625
    %v56 = vld [vmem:[%s1] sm:$0xff]
    %v57 = vld [vmem:[%s1 + $0x8] sm:$0xff]
    %v58 = vld [vmem:[%s2] sm:$0x1]
    %v60 = vlaneseq
    %v61 = vshrl.u32 %v60, 7
    %v62 = vsub.s32 0, %v61
    %v63 = vrot.slane %v58, %v62
    %v69 = vlaneseq
    %v70 = vand.u32 %v69, 127
    %v71 = vlaneseq
    %v72 = vshrl.u32 %v71, 7
    %v73 = vsub.s32 %v70, %v72
    %v74 = vrot.slane %v52, %v73
    %v75 = vadd.s32 %v70, 4294967288
    %v76 = vlaneseq
    %v77 = vshrl.u32 %v76, 7
    %v78 = vsub.s32 %v75, %v77
    %v79 = vrot.slane %v53, %v78
    %vm80 = vcmask 130112
    %v81 = vsel %vm80, %v79, %v74
    %v82 = vlaneseq
    %v83 = vshrl.u32 %v82, 7
    %v84 = vsub.s32 %v70, %v83
    %v85 = vrot.slane %v54, %v84
    %v86 = vlaneseq
    %v87 = vshrl.u32 %v86, 7
    %v88 = vsub.s32 %v75, %v87
    %v89 = vrot.slane %v55, %v88
    %v90 = vsel %vm80, %v89, %v85
    %vm91 = vcmask 1041409
    %v92 = vsel %vm91, %v90, %v81
    %v93 = vsel %vm39, %v92, 0
    %95 = vmatprep.subr.mxu0 0.0
    %96 = vmatpush1.msra.mxu0 %v56
    %97 = vmatprep.subr.mxu0 0.0
    %98 = vmatpush1.msra.mxu0 %v57
    %99 = vmatprep.subr.mxu0 0.0
    %100 = vmatpush1.msra.mxu0 0.0
    %101 = vmatprep.subr.mxu0 0.0
    %102 = vmatpush1.msra.mxu0 0.0
    %103 = vmatprep.subr.mxu0 0.0
    %104 = vmatpush1.msra.mxu0 0.0
    %105 = vmatprep.subr.mxu0 0.0
    %106 = vmatpush1.msra.mxu0 0.0
    %107 = vmatprep.subr.mxu0 0.0
    %108 = vmatpush1.msra.mxu0 0.0
    %109 = vmatprep.subr.mxu0 0.0
    %110 = vmatpush1.msra.mxu0 0.0
    %111 = vmatprep.subr.mxu0 0.0
    %112 = vmatpush1.msra.mxu0 0.0
    %113 = vmatprep.subr.mxu0 0.0
    %114 = vmatpush1.msra.mxu0 0.0
    %115 = vmatprep.subr.mxu0 0.0
    %116 = vmatpush1.msra.mxu0 0.0
    %117 = vmatprep.subr.mxu0 0.0
    %118 = vmatpush1.msra.mxu0 0.0
    %119 = vmatprep.subr.mxu0 0.0
    %120 = vmatpush1.msra.mxu0 0.0
    %121 = vmatprep.subr.mxu0 0.0
    %122 = vmatpush1.msra.mxu0 0.0
    %123 = vmatprep.subr.mxu0 0.0
    %124 = vmatpush1.msra.mxu0 0.0
    %125 = vmatprep.subr.mxu0 0.0
    %126 = vmatpush1.msra.mxu0 0.0
    %127 = vmatprep.subr.mxu0 0.0
    %128 = vmatpush1.msra.mxu0 0.0
    %129 = vmatprep.subr.mxu0 0.0
    %130 = vmatpush1.msra.mxu0 0.0
    %131 = vmatprep.subr.mxu0 0.0
    %132 = vmatpush1.msra.mxu0 0.0
    %133 = vmatprep.subr.mxu0 0.0
    %134 = vmatpush1.msra.mxu0 0.0
    %135 = vmatprep.subr.mxu0 0.0
    %136 = vmatpush1.msra.mxu0 0.0
    %137 = vmatprep.subr.mxu0 0.0
    %138 = vmatpush1.msra.mxu0 0.0
    %139 = vmatprep.subr.mxu0 0.0
    %140 = vmatpush1.msra.mxu0 0.0
    %141 = vmatprep.subr.mxu0 0.0
    %142 = vmatpush1.msra.mxu0 0.0
    %143 = vmatprep.subr.mxu0 0.0
    %144 = vmatpush1.msra.mxu0 0.0
    %145 = vmatprep.subr.mxu0 0.0
    %146 = vmatpush1.msra.mxu0 0.0
    %147 = vmatprep.subr.mxu0 0.0
    %148 = vmatpush1.msra.mxu0 0.0
    %149 = vmatprep.subr.mxu0 0.0
    %150 = vmatpush1.msra.mxu0 0.0
    %151 = vmatprep.subr.mxu0 0.0
    %152 = vmatpush1.msra.mxu0 0.0
    %153 = vmatprep.subr.mxu0 0.0
    %154 = vmatpush1.msra.mxu0 0.0
    %155 = vmatprep.subr.mxu0 0.0
    %156 = vmatpush1.msra.mxu0 0.0
    %157 = vmatprep.subr.mxu0 0.0
    %158 = vmatpush1.msra.mxu0 0.0
    %159 = vmatprep.mubr.f32.mxu0 0.0
    %160 = vmatmul.mubr.f32.gmra.mrb[0].mxu0 %v93
    %v161 = vpop.f32.mrb[0].mxu0
    %v162 = vadd.f32 %v63, %v161
    %v163 = vpop.f32.mrb[0].mxu0
    %164 = vdwg.mxu0
    %v165 = vmax.f32 %v162, 0.0
    %v166 = vld [vmem:[%s3] sm:$0xff]
    %v167 = vld [vmem:[%s4] sm:$0x1]
    %v169 = vlaneseq
    %v170 = vshrl.u32 %v169, 7
    %v171 = vsub.s32 0, %v170
    %v172 = vrot.slane %v167, %v171
    %vm174 = vcmask 64512
    %v176 = vsel %vm174, %v165, 0
    %178 = vmatprep.subr.mxu0 0.0
    %179 = vmatpush1.msra.mxu0 %v166
    %180 = vmatprep.subr.mxu0 0.0
    %181 = vmatpush1.msra.mxu0 0.0
    %182 = vmatprep.subr.mxu0 0.0
    %183 = vmatpush1.msra.mxu0 0.0
    %184 = vmatprep.subr.mxu0 0.0
    %185 = vmatpush1.msra.mxu0 0.0
    %186 = vmatprep.subr.mxu0 0.0
    %187 = vmatpush1.msra.mxu0 0.0
    %188 = vmatprep.subr.mxu0 0.0
    %189 = vmatpush1.msra.mxu0 0.0
    %190 = vmatprep.subr.mxu0 0.0
    %191 = vmatpush1.msra.mxu0 0.0
    %192 = vmatprep.subr.mxu0 0.0
    %193 = vmatpush1.msra.mxu0 0.0
    %194 = vmatprep.subr.mxu0 0.0
    %195 = vmatpush1.msra.mxu0 0.0
    %196 = vmatprep.subr.mxu0 0.0
    %197 = vmatpush1.msra.mxu0 0.0
    %198 = vmatprep.subr.mxu0 0.0
    %199 = vmatpush1.msra.mxu0 0.0
    %200 = vmatprep.subr.mxu0 0.0
    %201 = vmatpush1.msra.mxu0 0.0
    %202 = vmatprep.subr.mxu0 0.0
    %203 = vmatpush1.msra.mxu0 0.0
    %204 = vmatprep.subr.mxu0 0.0
    %205 = vmatpush1.msra.mxu0 0.0
    %206 = vmatprep.subr.mxu0 0.0
    %207 = vmatpush1.msra.mxu0 0.0
    %208 = vmatprep.subr.mxu0 0.0
    %209 = vmatpush1.msra.mxu0 0.0
    %210 = vmatprep.subr.mxu0 0.0
    %211 = vmatpush1.msra.mxu0 0.0
    %212 = vmatprep.subr.mxu0 0.0
    %213 = vmatpush1.msra.mxu0 0.0
    %214 = vmatprep.subr.mxu0 0.0
    %215 = vmatpush1.msra.mxu0 0.0
    %216 = vmatprep.subr.mxu0 0.0
    %217 = vmatpush1.msra.mxu0 0.0
    %218 = vmatprep.subr.mxu0 0.0
    %219 = vmatpush1.msra.mxu0 0.0
    %220 = vmatprep.subr.mxu0 0.0
    %221 = vmatpush1.msra.mxu0 0.0
    %222 = vmatprep.subr.mxu0 0.0
    %223 = vmatpush1.msra.mxu0 0.0
    %224 = vmatprep.subr.mxu0 0.0
    %225 = vmatpush1.msra.mxu0 0.0
    %226 = vmatprep.subr.mxu0 0.0
    %227 = vmatpush1.msra.mxu0 0.0
    %228 = vmatprep.subr.mxu0 0.0
    %229 = vmatpush1.msra.mxu0 0.0
    %230 = vmatprep.subr.mxu0 0.0
    %231 = vmatpush1.msra.mxu0 0.0
    %232 = vmatprep.subr.mxu0 0.0
    %233 = vmatpush1.msra.mxu0 0.0
    %234 = vmatprep.subr.mxu0 0.0
    %235 = vmatpush1.msra.mxu0 0.0
    %236 = vmatprep.subr.mxu0 0.0
    %237 = vmatpush1.msra.mxu0 0.0
    %238 = vmatprep.subr.mxu0 0.0
    %239 = vmatpush1.msra.mxu0 0.0
    %240 = vmatprep.subr.mxu0 0.0
    %241 = vmatpush1.msra.mxu0 0.0
    %242 = vmatprep.mubr.f32.mxu0 0.0
    %243 = vmatmul.mubr.f32.gmra.mrb[0].mxu0 %v176
    %v244 = vpop.f32.mrb[0].mxu0
    %v245 = vadd.f32 %v172, %v244
    %v246 = vpop.f32.mrb[0].mxu0
    %247 = vdwg.mxu0
    %v248 = vxor.u32 %v245, 2147483648
    %v249 = vmul.f32 %v248, 1.442695
    %v250 = vpow.pop %v249
    %v251 = vadd.f32 %v250, 1.0
    %v252 = vrcp.pop %v251
    %v253 = vmul.f32 1.0, %v252
    %v254 = vlaneseq
    %v255 = vshrl.u32 %v254, 7
    %v256 = vsub.s32 0, %v255
    %v257 = vrot.slane %v253, %v256
    %259 = vbcast.lane.b32.xlu0 %v257, 256
    %v260 = vpop.permute.xlu0 %259
    %s262 = sor.u32 256, 8
    %263 = vbcast.lane.b32.xlu0 %v257, %s262
    %v264 = vpop.permute.xlu0 %263
    %v265 = vlaneseq
    %v266 = vshrl.u32 %v265, 7
    %v267 = vsub.s32 1, %v266
    %v268 = vrot.slane %v253, %v267
    %270 = vbcast.lane.b32.xlu0 %v268, 256
    %v271 = vpop.permute.xlu0 %270
    %s273 = sor.u32 256, 8
    %274 = vbcast.lane.b32.xlu0 %v268, %s273
    %v275 = vpop.permute.xlu0 %274
    %v276 = vmul.f32 %v260, %v35
    %v277 = vmul.f32 %v264, %v36
    %v278 = vmul.f32 %v271, %v37
    %v279 = vmul.f32 %v275, %v38
    %280 = vst.msk [vmem:[#allocation5] sm:$0xff] %vm39, %v276
    %281 = vst.msk [vmem:[#allocation5 + $0x8] sm:$0xff] %vm39, %v277
    %282 = vst.msk [vmem:[#allocation5 + $0x10] sm:$0xff] %vm39, %v278
    %283 = vst.msk [vmem:[#allocation5 + $0x18] sm:$0xff] %vm39, %v279
    // Predicated region
    $region26: #{tpu_custom_call.1} parent=1 // pred_check
      _
    $region27: #{tpu_custom_call.1} parent=1 // pred_check_branch
      %285 = sbr.rel (0) target = $region29
    $region28: #{tpu_custom_call.1} parent=1 // pred_region
      %s287 = ssub.s32 512, 512
      %288 = vsyncadd [#allocation4], %s287
      %s289 = sshll.u32 [#allocation5], 4
      %s290 = int_to_ptr.vmem [resolvable:$true] %s289
      %295 = dma.vmem_to_hbm [thread:$0]  %s290, 512, %s5, [#allocation4], 128, 128, 8
    $region29: #{tpu_custom_call.1} parent=1 // pred_fallthru
      _
    // Predicated region
    $region30: #{tpu_custom_call.1} parent=1 // pred_check
      _
    $region31: #{tpu_custom_call.1} parent=1 // pred_check_branch
      %297 = sbr.rel (0) target = $region33
    $region32: #{tpu_custom_call.1} parent=1 // pred_region
      %298 = dma.done [#allocation4], 512
    $region33: #{tpu_custom_call.1} parent=1 // pred_fallthru
      _
    %299 = vsyncpa [#allocation3], 1
    %300 = vsyncpa [#allocation4], 1

</llo_original>
